<compile_context>
chip_gen: v7x
topology: tpu7x:2x2x1
jax: 0.10.0
libtpu: 0.0.40
codegen_flags: <defaults>
</compile_context>

<pallas_src>
import math

import numpy as np
import jax
import jax.numpy as jnp
from jax import lax
from jax.experimental import pallas as pl
from jax.experimental.pallas import tpu as pltpu


# ---------------------------------------------------------------------------
# Lanczos lgamma (g=5, n=6, Numerical-Recipes coefficients), folded at import
# time (float64 numpy) into a single rational A(z) = P(z)/Q(z):
#   lgamma(z) = (z+0.5)*log(z+5.5) - (z+5.5) + log(sqrt(2*pi)*A(z)/z),  z > 0
# absolute error < ~2e-10, far below float32 needs.
# ---------------------------------------------------------------------------
_LANCZOS_SER0 = 1.000000000190015
_LANCZOS_COF = (
    76.18009172947146,
    -86.50532032941677,
    24.01409824083091,
    -1.231739572450155,
    0.1208650973866179e-2,
    -0.5395239384953e-5,
)
_SQRT_2PI = 2.5066282746310005
_LANCZOS_SHIFT = 5.5  # g + 0.5


def _fold_lanczos():
    """Fold ser0 + sum_j c_j/(z+j), j=1..6 into P(z)/Q(z), Q(z)=prod_j(z+j)."""
    n = len(_LANCZOS_COF)
    q = np.poly1d([1.0])
    for j in range(1, n + 1):
        q = q * np.poly1d([1.0, float(j)])
    p = np.poly1d(np.asarray(q.coeffs, dtype=np.float64) * float(_LANCZOS_SER0))
    for j in range(1, n + 1):
        qj = np.poly1d([1.0])
        for k in range(1, n + 1):
            if k != j:
                qj = qj * np.poly1d([1.0, float(k)])
        p = p + np.poly1d(
            np.asarray(qj.coeffs, dtype=np.float64) * float(_LANCZOS_COF[j - 1]))
    return tuple(float(v) for v in p.coeffs), tuple(float(v) for v in q.coeffs)


_P_COEFS, _Q_COEFS = _fold_lanczos()  # degree-6 / degree-6, highest first


def _check_fold():
    """Host-side float64 sanity check of the folded rational vs math.lgamma."""
    for v in (0.07, 0.5, 1.0, 2.3, 9.7, 42.0, 311.0):
        p = float(np.polyval(np.asarray(_P_COEFS), v))
        q = float(np.polyval(np.asarray(_Q_COEFS), v))
        lg = ((v + 0.5) * math.log(v + _LANCZOS_SHIFT) - (v + _LANCZOS_SHIFT)
              + math.log(_SQRT_2PI * (p / q) / v))
        ref = math.lgamma(v)
        assert abs(lg - ref) < 1e-8 * max(1.0, abs(ref)), (v, lg, ref)


_check_fold()


def _horner(coefs, z):
    acc = coefs[0] * z + coefs[1]
    for c in coefs[2:]:
        acc = acc * z + c
    return acc


def _lgamma_diff(x, y, t):
    """Elementwise lgamma(x) - lgamma(y), y = x + t, for x > 0, t >= 0.

    Fused form: the sqrt(2*pi) terms cancel and the two rational-A ratios fold
    into 2 divides + 1 log.  Exactly 0 when t == 0 (all operands bitwise
    identical), which makes zero-padded batch columns contribute nothing.
    """
    big = ((x + 0.5) * jnp.log(x + _LANCZOS_SHIFT)
           - (y + 0.5) * jnp.log(y + _LANCZOS_SHIFT))
    px = _horner(_P_COEFS, x)
    qx = _horner(_Q_COEFS, x)
    py = _horner(_P_COEFS, y)
    qy = _horner(_Q_COEFS, y)
    # ratio = (A(x)*y) / (A(y)*x) with A = P/Q, grouped so intermediates stay
    # <= ~x^7 (float32-safe up to x ~ 3e5).
    r = ((px * y) / (py * x)) * (qy / qx)
    return big + t + jnp.log(r)


# ---------------------------------------------------------------------------
# Kernel
# ---------------------------------------------------------------------------
def _make_kernel(batch, tb):
    """batch: true (unpadded) batch size; tb: lane-tile over the batch axis."""

    def kernel(x_ref, t_ref, out_ref):
        i = pl.program_id(0)
        x = x_ref[...]                      # (C, tb) f32, batch on lanes
        t = t_ref[...]                      # (C, tb) f32
        y = x + t

        # Pointwise piece: sum_{c} [lgamma(x) - lgamma(x + t)]
        # (padded columns have t == 0 -> contribute exactly 0).
        diff = _lgamma_diff(x, y, t)

        # Per-row piece: lgamma(s+1) - lgamma(s) == log(s), s = per-sample sum.
        # The mask only matters for the <=127 zero-padded columns of the last
        # tile; it runs on a (1, tb) row so its cost is ~1/C of the pointwise
        # work and is left unconditional.
        s = jnp.sum(x, axis=0, keepdims=True)                         # (1, tb)
        col = lax.broadcasted_iota(jnp.int32, (1, tb), 1) + i * tb
        log_row = jnp.where(col < batch, jnp.log(s), 0.0)

        partial = jnp.sum(diff) + jnp.sum(log_row)

        # Per-tile partial sum -> disjoint lane-aligned (1,128) output block
        # (lane 0 carries the value); no loop-carried accumulator, so the
        # batch-tile axis can be "parallel" (2 TCs on v7x).
        lane = lax.broadcasted_iota(jnp.int32, (1, 128), 1)
        out_ref[...] = jnp.where(lane == 0, partial, 0.0)

    return kernel


def _round_up(n, m):
    return ((n + m - 1) // m) * m


def my_loss(outputs, targets, *, block_bytes=4 << 20):
    """Pallas TPU implementation of MyLoss.forward (alpha_prior=None path).

    outputs, targets: (batch, num_class); outputs must be positive (Dirichlet
    concentrations), targets non-negative counts.
    """
    outputs = jnp.asarray(outputs, jnp.float32)
    targets = jnp.asarray(targets, jnp.float32)
    B, C = outputs.shape

    # Batch tile: as large as a ~block_bytes VMEM block allows (2 inputs x 2
    # pipeline buffers stays well inside scoped VMEM on all generations); tiles
    # are balanced so batch padding never exceeds 127 columns per tile.
    b128 = _round_up(B, 128)
    tb_cap = max(128, (block_bytes // (C * 4)) // 128 * 128)
    grid = max(1, -(-b128 // tb_cap))          # ceil-div
    tb = _round_up(-(-b128 // grid), 128)
    b_pad = grid * tb
    pad = b_pad - B

    # Lane-dense layout: batch -> lanes (layout plumbing only).
    x_t = outputs.T                            # (C, B)
    t_t = targets.T
    if pad:
        # outputs padded with 1.0, targets with 0.0: the fused pointwise term
        # on padded columns is exactly 0; their log(row-sum) term is masked
        # inside the kernel.
        x_t = jnp.pad(x_t, ((0, 0), (0, pad)), constant_values=1.0)
        t_t = jnp.pad(t_t, ((0, 0), (0, pad)), constant_values=0.0)

    cost = pl.CostEstimate(
        flops=int(70 * b_pad * C),
        transcendentals=int(5 * b_pad * C + b_pad),
        bytes_accessed=int(2 * b_pad * C * 4 + 128 * grid * 4),
    )

    partials = pl.pallas_call(
        _make_kernel(B, tb),
        out_shape=jax.ShapeDtypeStruct((1, 128 * grid), jnp.float32),
        grid_spec=pltpu.PrefetchScalarGridSpec(
            num_scalar_prefetch=0,
            grid=(grid,),
            in_specs=[
                pl.BlockSpec((C, tb), lambda i: (0, i)),
                pl.BlockSpec((C, tb), lambda i: (0, i)),
            ],
            out_specs=pl.BlockSpec((1, 128), lambda i: (0, i)),
        ),
        compiler_params=pltpu.CompilerParams(
            dimension_semantics=("parallel",),
        ),
        cost_estimate=cost,
    )(x_t, t_t)

    return jnp.sum(partials) * (1.0 / B)


def my_loss_ref(outputs, targets):
    """Pure-JAX reference (mirrors the PyTorch forward line by line)."""
    lg = jax.scipy.special.gammaln
    loss = jnp.sum(lg(outputs), axis=1)
    loss += lg(jnp.sum(outputs, axis=1) + 1.0)
    loss -= jnp.sum(lg(outputs + targets), axis=1)
    loss -= lg(jnp.sum(outputs, axis=1))
    return jnp.mean(loss)


if __name__ == "__main__":
    key = jax.random.PRNGKey(0)
    k1, k2, k3, k4 = jax.random.split(key, 4)

    # Primary small test: (batch, num_class) as in the module.
    B, C = 8, 16
    outputs = jax.random.uniform(k1, (B, C), jnp.float32, minval=0.1, maxval=5.0)
    targets = jax.random.randint(k2, (B, C), 0, 4).astype(jnp.float32)

    loss = jax.block_until_ready(my_loss(outputs, targets))
    ref = jax.block_until_ready(my_loss_ref(outputs, targets))
    assert np.isfinite(float(loss))
    assert np.allclose(float(loss), float(ref), rtol=1e-4, atol=1e-3), (
        float(loss), float(ref))

    # Second test: non-multiple-of-128 batch exercising padding + in-kernel mask
    # (single balanced tile: 600 -> 640, only 40 padded columns).
    B2, C2 = 600, 10
    outputs2 = jax.random.uniform(k3, (B2, C2), jnp.float32, minval=0.05, maxval=8.0)
    targets2 = jax.random.randint(k4, (B2, C2), 0, 6).astype(jnp.float32)

    loss2 = jax.block_until_ready(my_loss(outputs2, targets2))
    ref2 = jax.block_until_ready(my_loss_ref(outputs2, targets2))
    assert np.isfinite(float(loss2))
    assert np.allclose(float(loss2), float(ref2), rtol=1e-4, atol=1e-3), (
        float(loss2), float(ref2))

    # Third test: tiny per-block cap to force a multi-tile grid (grid=5) and
    # exercise the parallel per-tile partial-sum outputs.
    loss3 = jax.block_until_ready(my_loss(outputs2, targets2, block_bytes=5120))
    assert np.isfinite(float(loss3))
    assert np.allclose(float(loss3), float(ref2), rtol=1e-4, atol=1e-3), (
        float(loss3), float(ref2))

    print("KERNEL_OK")
</pallas_src>

<mosaic_0001>
module attributes {stable_mosaic.version = 11 : i64} {
  func.func @kernel(%arg0: i32, %arg1: memref<16x128xf32, #tpu.memory_space<vmem>>, %arg2: memref<16x128xf32, #tpu.memory_space<vmem>>, %arg3: memref<1x128xf32, #tpu.memory_space<vmem>>) attributes {dimension_semantics = [#tpu.dimension_semantics<parallel>], iteration_bounds = array<i64: 1>, scalar_prefetch = 0 : i64, scratch_operands = 0 : i64, tpu.core_type = #tpu.core_type<tc>, window_params = [{transform_indices = @transform_0, window_bounds = array<i64: 16, 128>}, {transform_indices = @transform_1, window_bounds = array<i64: 16, 128>}, {transform_indices = @transform_2, window_bounds = array<i64: 1, 128>}]} {
    %c0 = arith.constant 0 : index
    %c0_0 = arith.constant 0 : index
    %0 = vector.load %arg1[%c0, %c0_0] : memref<16x128xf32, #tpu.memory_space<vmem>>, vector<16x128xf32>
    %c0_1 = arith.constant 0 : index
    %c0_2 = arith.constant 0 : index
    %1 = vector.load %arg2[%c0_1, %c0_2] : memref<16x128xf32, #tpu.memory_space<vmem>>, vector<16x128xf32>
    %2 = arith.addf %0, %1 : vector<16x128xf32>
    %cst = arith.constant 5.000000e-01 : f32
    %3 = vector.broadcast %cst : f32 to vector<16x128xf32>
    %4 = arith.addf %0, %3 : vector<16x128xf32>
    %cst_3 = arith.constant 5.500000e+00 : f32
    %5 = vector.broadcast %cst_3 : f32 to vector<16x128xf32>
    %6 = arith.addf %0, %5 : vector<16x128xf32>
    %7 = math.log %6 : vector<16x128xf32>
    %8 = arith.mulf %4, %7 : vector<16x128xf32>
    %cst_4 = arith.constant 5.000000e-01 : f32
    %9 = vector.broadcast %cst_4 : f32 to vector<16x128xf32>
    %10 = arith.addf %2, %9 : vector<16x128xf32>
    %cst_5 = arith.constant 5.500000e+00 : f32
    %11 = vector.broadcast %cst_5 : f32 to vector<16x128xf32>
    %12 = arith.addf %2, %11 : vector<16x128xf32>
    %13 = math.log %12 : vector<16x128xf32>
    %14 = arith.mulf %10, %13 : vector<16x128xf32>
    %15 = arith.subf %8, %14 : vector<16x128xf32>
    %cst_6 = arith.constant 1.000000e+00 : f32
    %16 = vector.broadcast %cst_6 : f32 to vector<16x128xf32>
    %17 = arith.mulf %16, %0 : vector<16x128xf32>
    %cst_7 = arith.constant 33.4583321 : f32
    %18 = vector.broadcast %cst_7 : f32 to vector<16x128xf32>
    %19 = arith.addf %17, %18 : vector<16x128xf32>
    %20 = arith.mulf %19, %0 : vector<16x128xf32>
    %cst_8 = arith.constant 466.334198 : f32
    %21 = vector.broadcast %cst_8 : f32 to vector<16x128xf32>
    %22 = arith.addf %20, %21 : vector<16x128xf32>
    %23 = arith.mulf %22, %0 : vector<16x128xf32>
    %cst_9 = arith.constant 3465.70947 : f32
    %24 = vector.broadcast %cst_9 : f32 to vector<16x128xf32>
    %25 = arith.addf %23, %24 : vector<16x128xf32>
    %26 = arith.mulf %25, %0 : vector<16x128xf32>
    %cst_10 = arith.constant 14484.9141 : f32
    %27 = vector.broadcast %cst_10 : f32 to vector<16x128xf32>
    %28 = arith.addf %26, %27 : vector<16x128xf32>
    %29 = arith.mulf %28, %0 : vector<16x128xf32>
    %cst_11 = arith.constant 32281.0645 : f32
    %30 = vector.broadcast %cst_11 : f32 to vector<16x128xf32>
    %31 = arith.addf %29, %30 : vector<16x128xf32>
    %32 = arith.mulf %31, %0 : vector<16x128xf32>
    %cst_12 = arith.constant 29969.5938 : f32
    %33 = vector.broadcast %cst_12 : f32 to vector<16x128xf32>
    %34 = arith.addf %32, %33 : vector<16x128xf32>
    %cst_13 = arith.constant 1.000000e+00 : f32
    %35 = vector.broadcast %cst_13 : f32 to vector<16x128xf32>
    %36 = arith.mulf %35, %0 : vector<16x128xf32>
    %cst_14 = arith.constant 2.100000e+01 : f32
    %37 = vector.broadcast %cst_14 : f32 to vector<16x128xf32>
    %38 = arith.addf %36, %37 : vector<16x128xf32>
    %39 = arith.mulf %38, %0 : vector<16x128xf32>
    %cst_15 = arith.constant 1.750000e+02 : f32
    %40 = vector.broadcast %cst_15 : f32 to vector<16x128xf32>
    %41 = arith.addf %39, %40 : vector<16x128xf32>
    %42 = arith.mulf %41, %0 : vector<16x128xf32>
    %cst_16 = arith.constant 7.350000e+02 : f32
    %43 = vector.broadcast %cst_16 : f32 to vector<16x128xf32>
    %44 = arith.addf %42, %43 : vector<16x128xf32>
    %45 = arith.mulf %44, %0 : vector<16x128xf32>
    %cst_17 = arith.constant 1.624000e+03 : f32
    %46 = vector.broadcast %cst_17 : f32 to vector<16x128xf32>
    %47 = arith.addf %45, %46 : vector<16x128xf32>
    %48 = arith.mulf %47, %0 : vector<16x128xf32>
    %cst_18 = arith.constant 1.764000e+03 : f32
    %49 = vector.broadcast %cst_18 : f32 to vector<16x128xf32>
    %50 = arith.addf %48, %49 : vector<16x128xf32>
    %51 = arith.mulf %50, %0 : vector<16x128xf32>
    %cst_19 = arith.constant 7.200000e+02 : f32
    %52 = vector.broadcast %cst_19 : f32 to vector<16x128xf32>
    %53 = arith.addf %51, %52 : vector<16x128xf32>
    %cst_20 = arith.constant 1.000000e+00 : f32
    %54 = vector.broadcast %cst_20 : f32 to vector<16x128xf32>
    %55 = arith.mulf %54, %2 : vector<16x128xf32>
    %cst_21 = arith.constant 33.4583321 : f32
    %56 = vector.broadcast %cst_21 : f32 to vector<16x128xf32>
    %57 = arith.addf %55, %56 : vector<16x128xf32>
    %58 = arith.mulf %57, %2 : vector<16x128xf32>
    %cst_22 = arith.constant 466.334198 : f32
    %59 = vector.broadcast %cst_22 : f32 to vector<16x128xf32>
    %60 = arith.addf %58, %59 : vector<16x128xf32>
    %61 = arith.mulf %60, %2 : vector<16x128xf32>
    %cst_23 = arith.constant 3465.70947 : f32
    %62 = vector.broadcast %cst_23 : f32 to vector<16x128xf32>
    %63 = arith.addf %61, %62 : vector<16x128xf32>
    %64 = arith.mulf %63, %2 : vector<16x128xf32>
    %cst_24 = arith.constant 14484.9141 : f32
    %65 = vector.broadcast %cst_24 : f32 to vector<16x128xf32>
    %66 = arith.addf %64, %65 : vector<16x128xf32>
    %67 = arith.mulf %66, %2 : vector<16x128xf32>
    %cst_25 = arith.constant 32281.0645 : f32
    %68 = vector.broadcast %cst_25 : f32 to vector<16x128xf32>
    %69 = arith.addf %67, %68 : vector<16x128xf32>
    %70 = arith.mulf %69, %2 : vector<16x128xf32>
    %cst_26 = arith.constant 29969.5938 : f32
    %71 = vector.broadcast %cst_26 : f32 to vector<16x128xf32>
    %72 = arith.addf %70, %71 : vector<16x128xf32>
    %cst_27 = arith.constant 1.000000e+00 : f32
    %73 = vector.broadcast %cst_27 : f32 to vector<16x128xf32>
    %74 = arith.mulf %73, %2 : vector<16x128xf32>
    %cst_28 = arith.constant 2.100000e+01 : f32
    %75 = vector.broadcast %cst_28 : f32 to vector<16x128xf32>
    %76 = arith.addf %74, %75 : vector<16x128xf32>
    %77 = arith.mulf %76, %2 : vector<16x128xf32>
    %cst_29 = arith.constant 1.750000e+02 : f32
    %78 = vector.broadcast %cst_29 : f32 to vector<16x128xf32>
    %79 = arith.addf %77, %78 : vector<16x128xf32>
    %80 = arith.mulf %79, %2 : vector<16x128xf32>
    %cst_30 = arith.constant 7.350000e+02 : f32
    %81 = vector.broadcast %cst_30 : f32 to vector<16x128xf32>
    %82 = arith.addf %80, %81 : vector<16x128xf32>
    %83 = arith.mulf %82, %2 : vector<16x128xf32>
    %cst_31 = arith.constant 1.624000e+03 : f32
    %84 = vector.broadcast %cst_31 : f32 to vector<16x128xf32>
    %85 = arith.addf %83, %84 : vector<16x128xf32>
    %86 = arith.mulf %85, %2 : vector<16x128xf32>
    %cst_32 = arith.constant 1.764000e+03 : f32
    %87 = vector.broadcast %cst_32 : f32 to vector<16x128xf32>
    %88 = arith.addf %86, %87 : vector<16x128xf32>
    %89 = arith.mulf %88, %2 : vector<16x128xf32>
    %cst_33 = arith.constant 7.200000e+02 : f32
    %90 = vector.broadcast %cst_33 : f32 to vector<16x128xf32>
    %91 = arith.addf %89, %90 : vector<16x128xf32>
    %92 = arith.mulf %34, %2 : vector<16x128xf32>
    %93 = arith.mulf %72, %0 : vector<16x128xf32>
    %94 = arith.divf %92, %93 : vector<16x128xf32>
    %95 = arith.divf %91, %53 : vector<16x128xf32>
    %96 = arith.mulf %94, %95 : vector<16x128xf32>
    %97 = arith.addf %15, %1 : vector<16x128xf32>
    %98 = math.log %96 : vector<16x128xf32>
    %99 = arith.addf %97, %98 : vector<16x128xf32>
    %cst_34 = arith.constant dense<0.000000e+00> : vector<128xf32>
    %100 = vector.multi_reduction <add>, %0, %cst_34 [0] : vector<16x128xf32> to vector<128xf32>
    %101 = vector.shape_cast %100 : vector<128xf32> to vector<1x128xf32>
    %102 = tpu.iota {dimensions = array<i32: 1>} : vector<1x128xi32>
    %c128_i32 = arith.constant 128 : i32
    %103 = arith.muli %arg0, %c128_i32 : i32
    %104 = vector.broadcast %103 : i32 to vector<1x128xi32>
    %105 = arith.addi %102, %104 : vector<1x128xi32>
    %c8_i32 = arith.constant 8 : i32
    %106 = vector.broadcast %c8_i32 : i32 to vector<1x128xi32>
    %107 = arith.cmpi slt, %105, %106 : vector<1x128xi32>
    %108 = math.log %101 : vector<1x128xf32>
    %cst_35 = arith.constant 0.000000e+00 : f32
    %109 = vector.broadcast %cst_35 : f32 to vector<1x128xf32>
    %110 = arith.select %107, %108, %109 : vector<1x128xi1>, vector<1x128xf32>
    %111 = vector.shape_cast %99 : vector<16x128xf32> to vector<1x16x128xf32>
    %cst_36 = arith.constant dense<0.000000e+00> : vector<1xf32>
    %112 = vector.multi_reduction <add>, %111, %cst_36 [1, 2] : vector<1x16x128xf32> to vector<1xf32>
    %113 = vector.shape_cast %112 : vector<1xf32> to vector<1x1x1xf32>
    %114 = vector.extract %113[0, 0, 0] : f32 from vector<1x1x1xf32>
    %115 = vector.shape_cast %110 : vector<1x128xf32> to vector<1x1x128xf32>
    %cst_37 = arith.constant dense<0.000000e+00> : vector<1xf32>
    %116 = vector.multi_reduction <add>, %115, %cst_37 [1, 2] : vector<1x1x128xf32> to vector<1xf32>
    %117 = vector.shape_cast %116 : vector<1xf32> to vector<1x1x1xf32>
    %118 = vector.extract %117[0, 0, 0] : f32 from vector<1x1x1xf32>
    %119 = arith.addf %114, %118 : f32
    %120 = tpu.iota {dimensions = array<i32: 1>} : vector<1x128xi32>
    %c0_i32 = arith.constant 0 : i32
    %121 = vector.broadcast %c0_i32 : i32 to vector<1x128xi32>
    %122 = arith.cmpi eq, %120, %121 : vector<1x128xi32>
    %cst_38 = arith.constant 0.000000e+00 : f32
    %123 = vector.broadcast %119 : f32 to vector<1x128xf32>
    %124 = vector.broadcast %cst_38 : f32 to vector<1x128xf32>
    %125 = arith.select %122, %123, %124 : vector<1x128xi1>, vector<1x128xf32>
    %c0_39 = arith.constant 0 : index
    %c0_40 = arith.constant 0 : index
    %126 = vector.load %arg3[%c0_39, %c0_40] : memref<1x128xf32, #tpu.memory_space<vmem>>, vector<1x128xf32>
    tpu.vector_store %arg3[%c0_39, %c0_40], %125 {strides = array<i32>} : memref<1x128xf32, #tpu.memory_space<vmem>>, vector<1x128xf32>,
    return
  }
  func.func @transform_0(%arg0: i32) -> (i32, i32) {
    %c0_i32 = arith.constant 0 : i32
    %c0_i32_0 = arith.constant 0 : i32
    return %c0_i32, %arg0 : i32, i32
  }
  func.func @transform_1(%arg0: i32) -> (i32, i32) {
    %c0_i32 = arith.constant 0 : i32
    %c0_i32_0 = arith.constant 0 : i32
    return %c0_i32, %arg0 : i32, i32
  }
  func.func @transform_2(%arg0: i32) -> (i32, i32) {
    %c0_i32 = arith.constant 0 : i32
    %c0_i32_0 = arith.constant 0 : i32
    return %c0_i32, %arg0 : i32, i32
  }
}

</mosaic_0001>

<llo_original>
// kernel: tpu_custom_call.1
$region0: #{tpu_custom_call.1}
  #allocation0 [shape = 'u32[]', space=smem, size = 0x4, offset = 0x4, fixed_abs, tag = 'smem constant byte address 0x4 - core index']
  #allocation1 [shape = 'u32[144,128]{1,0:T(1,128)}', space=vmem, size = 0x12000, scoped, tag = 'internal scratch']
  %s0 = inlined_call_operand.hbm [shape: f32[16,128], index: 0, kind: input, shape index: {}]
  %s1 = inlined_call_operand.hbm [shape: f32[16,128], index: 1, kind: input, shape index: {}]
  %s2 = inlined_call_operand.hbm [shape: f32[1,128], index: 2, kind: output, shape index: {}]
  %s3 = sld [smem:[#allocation0]]
  $region26: #{tpu_custom_call.1} parent=0
    _
  %s5 = ssub.s32 1, %s3
  %s6 = scalar_select 0, %s5, %s3
  $region1: #{tpu_custom_call.1} parent=0
    #allocation2 [shape = 'u8[8192]{0}', space=vmem, size = 0x2000, scoped, tag = 'input window, operand 0, single buffered']
    #allocation3 [shape = 's32[1]{0}', space=sflag, size = 0x4, scoped, tag = 'scoped memory for tpu_custom_call.1']
    #allocation4 [shape = 's32[1]{0}', space=sflag, size = 0x4, scoped, tag = 'scoped memory for tpu_custom_call.1']
    #allocation5 [shape = 'u8[8192]{0}', space=vmem, size = 0x2000, scoped, tag = 'input window, operand 1, single buffered']
    #allocation6 [shape = 's32[1]{0}', space=sflag, size = 0x4, scoped, tag = 'scoped memory for tpu_custom_call.1']
    #allocation7 [shape = 'u8[512]{0}', space=vmem, size = 0x400, scoped, tag = 'output window, operand 0, single buffered']
    %7 = vsyncpa [#allocation3], 0
    %8 = vsyncpa [#allocation6], 0
    %9 = vsyncpa [#allocation4], 0
    // Predicated region
    $region2: #{tpu_custom_call.1} parent=1 // pred_check
      _
    $region3: #{tpu_custom_call.1} parent=1 // pred_check_branch
      %11 = sbr.rel (0) target = $region5
    $region4: #{tpu_custom_call.1} parent=1 // pred_region
      %s13 = ssub.s32 256, 256
      %14 = vsyncadd [#allocation3], %s13
      %s15 = sshll.u32 [#allocation2], 4
      %s16 = int_to_ptr.vmem [resolvable:$true] %s15
      %21 = dma.hbm_to_vmem [thread:$0]  %s0, 256, %s16, [#allocation3], 128, 128, 8
    $region5: #{tpu_custom_call.1} parent=1 // pred_fallthru
      _
    // Predicated region
    $region6: #{tpu_custom_call.1} parent=1 // pred_check
      _
    $region7: #{tpu_custom_call.1} parent=1 // pred_check_branch
      %23 = sbr.rel (0) target = $region9
    $region8: #{tpu_custom_call.1} parent=1 // pred_region
      %s25 = ssub.s32 256, 256
      %26 = vsyncadd [#allocation6], %s25
      %s27 = sshll.u32 [#allocation5], 4
      %s28 = int_to_ptr.vmem [resolvable:$true] %s27
      %33 = dma.hbm_to_vmem [thread:$0]  %s1, 256, %s28, [#allocation6], 128, 128, 8
    $region9: #{tpu_custom_call.1} parent=1 // pred_fallthru
      _
    // Predicated region
    $region10: #{tpu_custom_call.1} parent=1 // pred_check
      _
    $region11: #{tpu_custom_call.1} parent=1 // pred_check_branch
      %35 = sbr.rel (0) target = $region13
    $region12: #{tpu_custom_call.1} parent=1 // pred_region
      %36 = dma.done [#allocation3], 256
    $region13: #{tpu_custom_call.1} parent=1 // pred_fallthru
      _
    // Predicated region
    $region14: #{tpu_custom_call.1} parent=1 // pred_check
      _
    $region15: #{tpu_custom_call.1} parent=1 // pred_check_branch
      %38 = sbr.rel (0) target = $region17
    $region16: #{tpu_custom_call.1} parent=1 // pred_region
      %39 = dma.done [#allocation6], 256
    $region17: #{tpu_custom_call.1} parent=1 // pred_fallthru
      _
    %v40 = vld [vmem:[#allocation2] sm:$0xff]
    %v41 = vld [vmem:[#allocation2 + $0x8] sm:$0xff]
    %v42 = vld [vmem:[#allocation5] sm:$0xff]
    %v43 = vld [vmem:[#allocation5 + $0x8] sm:$0xff]
    %v44 = vadd.f32 %v40, %v42
    %v45 = vadd.f32 %v41, %v43
    %v46 = vadd.f32 %v40, 0.5
    %v47 = vadd.f32 %v41, 0.5
    %v48 = vadd.f32 %v40, 5.5
    %v49 = vadd.f32 %v41, 5.5
    %v50 = vlog2.pop %v48
    %v51 = vmul.f32 %v50, 0.6931472
    %v52 = vlog2.pop %v49
    %v53 = vmul.f32 %v52, 0.6931472
    %v54 = vmul.f32 %v46, %v51
    %v55 = vmul.f32 %v47, %v53
    %v56 = vadd.f32 %v44, 0.5
    %v57 = vadd.f32 %v45, 0.5
    %v58 = vadd.f32 %v44, 5.5
    %v59 = vadd.f32 %v45, 5.5
    %v60 = vlog2.pop %v58
    %v61 = vmul.f32 %v60, 0.6931472
    %v62 = vlog2.pop %v59
    %v63 = vmul.f32 %v62, 0.6931472
    %v64 = vmul.f32 %v56, %v61
    %v65 = vmul.f32 %v57, %v63
    %v66 = vsub.f32 %v54, %v64
    %v67 = vsub.f32 %v55, %v65
    %v68 = vadd.f32 %v40, 33.458332
    %v69 = vadd.f32 %v41, 33.458332
    %v70 = vmul.f32 %v68, %v40
    %v71 = vmul.f32 %v69, %v41
    %v72 = vadd.f32 %v70, 466.3342
    %v73 = vadd.f32 %v71, 466.3342
    %v74 = vmul.f32 %v72, %v40
    %v75 = vmul.f32 %v73, %v41
    %v76 = vadd.f32 %v74, 3465.7095
    %v77 = vadd.f32 %v75, 3465.7095
    %v78 = vmul.f32 %v76, %v40
    %v79 = vmul.f32 %v77, %v41
    %v80 = vadd.f32 %v78, 14484.914
    %v81 = vadd.f32 %v79, 14484.914
    %v82 = vmul.f32 %v80, %v40
    %v83 = vmul.f32 %v81, %v41
    %v84 = vadd.f32 %v82, 32281.064
    %v85 = vadd.f32 %v83, 32281.064
    %v86 = vmul.f32 %v84, %v40
    %v87 = vmul.f32 %v85, %v41
    %v88 = vadd.f32 %v86, 29969.594
    %v89 = vadd.f32 %v87, 29969.594
    %v90 = vadd.f32 %v40, 21.0
    %v91 = vadd.f32 %v41, 21.0
    %v92 = vmul.f32 %v90, %v40
    %v93 = vmul.f32 %v91, %v41
    %v94 = vadd.f32 %v92, 175.0
    %v95 = vadd.f32 %v93, 175.0
    %v96 = vmul.f32 %v94, %v40
    %v97 = vmul.f32 %v95, %v41
    %v98 = vadd.f32 %v96, 735.0
    %v99 = vadd.f32 %v97, 735.0
    %v100 = vmul.f32 %v98, %v40
    %v101 = vmul.f32 %v99, %v41
    %v102 = vadd.f32 %v100, 1624.0
    %v103 = vadd.f32 %v101, 1624.0
    %v104 = vmul.f32 %v102, %v40
    %v105 = vmul.f32 %v103, %v41
    %v106 = vadd.f32 %v104, 1764.0
    %v107 = vadd.f32 %v105, 1764.0
    %v108 = vmul.f32 %v106, %v40
    %v109 = vmul.f32 %v107, %v41
    %v110 = vadd.f32 %v108, 720.0
    %v111 = vadd.f32 %v109, 720.0
    %v112 = vadd.f32 %v44, 33.458332
    %v113 = vadd.f32 %v45, 33.458332
    %v114 = vmul.f32 %v112, %v44
    %v115 = vmul.f32 %v113, %v45
    %v116 = vadd.f32 %v114, 466.3342
    %v117 = vadd.f32 %v115, 466.3342
    %v118 = vmul.f32 %v116, %v44
    %v119 = vmul.f32 %v117, %v45
    %v120 = vadd.f32 %v118, 3465.7095
    %v121 = vadd.f32 %v119, 3465.7095
    %v122 = vmul.f32 %v120, %v44
    %v123 = vmul.f32 %v121, %v45
    %v124 = vadd.f32 %v122, 14484.914
    %v125 = vadd.f32 %v123, 14484.914
    %v126 = vmul.f32 %v124, %v44
    %v127 = vmul.f32 %v125, %v45
    %v128 = vadd.f32 %v126, 32281.064
    %v129 = vadd.f32 %v127, 32281.064
    %v130 = vmul.f32 %v128, %v44
    %v131 = vmul.f32 %v129, %v45
    %v132 = vadd.f32 %v130, 29969.594
    %v133 = vadd.f32 %v131, 29969.594
    %v134 = vadd.f32 %v44, 21.0
    %v135 = vadd.f32 %v45, 21.0
    %v136 = vmul.f32 %v134, %v44
    %v137 = vmul.f32 %v135, %v45
    %v138 = vadd.f32 %v136, 175.0
    %v139 = vadd.f32 %v137, 175.0
    %v140 = vmul.f32 %v138, %v44
    %v141 = vmul.f32 %v139, %v45
    %v142 = vadd.f32 %v140, 735.0
    %v143 = vadd.f32 %v141, 735.0
    %v144 = vmul.f32 %v142, %v44
    %v145 = vmul.f32 %v143, %v45
    %v146 = vadd.f32 %v144, 1624.0
    %v147 = vadd.f32 %v145, 1624.0
    %v148 = vmul.f32 %v146, %v44
    %v149 = vmul.f32 %v147, %v45
    %v150 = vadd.f32 %v148, 1764.0
    %v151 = vadd.f32 %v149, 1764.0
    %v152 = vmul.f32 %v150, %v44
    %v153 = vmul.f32 %v151, %v45
    %v154 = vadd.f32 %v152, 720.0
    %v155 = vadd.f32 %v153, 720.0
    %v156 = vmul.f32 %v88, %v44
    %v157 = vmul.f32 %v89, %v45
    %v158 = vmul.f32 %v132, %v40
    %v159 = vmul.f32 %v133, %v41
    %v160 = vrcp.pop %v158
    %v161 = vmul.f32 %v156, %v160
    %v162 = vrcp.pop %v159
    %v163 = vmul.f32 %v157, %v162
    %v164 = vrcp.pop %v110
    %v165 = vmul.f32 %v154, %v164
    %v166 = vrcp.pop %v111
    %v167 = vmul.f32 %v155, %v166
    %v168 = vmul.f32 %v161, %v165
    %v169 = vmul.f32 %v163, %v167
    %v170 = vadd.f32 %v66, %v42
    %v171 = vadd.f32 %v67, %v43
    %v172 = vlog2.pop %v168
    %v173 = vmul.f32 %v172, 0.6931472
    %v174 = vlog2.pop %v169
    %v175 = vmul.f32 %v174, 0.6931472
    %v176 = vadd.f32 %v170, %v173
    %v177 = vadd.f32 %v171, %v175
    %v178 = vadd.f32 %v40, %v41
    %v179 = vrot.slane %v178, 4
    %v180 = vadd.f32 %v178, %v179
    %v181 = vrot.slane %v180, 2
    %v182 = vadd.f32 %v180, %v181
    %v183 = vrot.slane %v182, 1
    %v184 = vadd.f32 %v182, %v183
    %v185 = vlaneseq
    %v186 = vand.u32 %v185, 127
    %s187 = smul.u32 0, 128
    %v188 = vstv %s187
    %v189 = vadd.s32 %v186, %v188
    %vm190 = vcmp.lt.s32.totalorder %v189, 8
    %v191 = vlog2.pop %v184
    %v192 = vmul.f32 %v191, 0.6931472
    %v193 = vsel %vm190, %v192, 0.0
    %v194 = vadd.f32 %v176, %v177
    %195 = vadd.xlane.f32.xlu0 %v194
    %v196 = vpop.xlane.xlu0 %195
    %v197 = vrot.slane %v196, 4
    %v198 = vadd.f32 %v196, %v197
    %v199 = vrot.slane %v198, 2
    %v200 = vadd.f32 %v198, %v199
    %v201 = vrot.slane %v200, 1
    %v202 = vadd.f32 %v200, %v201
    %s203 = vtos %v202
    %vm204 = vcmask 1040384
    %v205 = vsel %vm204, %v193, 0.0
    %206 = vadd.xlane.f32.xlu0 %v205
    %v207 = vpop.xlane.xlu0 %206
    %v208 = vrot.slane %v207, 4
    %v209 = vadd.f32 %v207, %v208
    %v210 = vrot.slane %v209, 2
    %v211 = vadd.f32 %v209, %v210
    %v212 = vrot.slane %v211, 1
    %v213 = vadd.f32 %v211, %v212
    %s214 = vtos %v213
    %s215 = sadd.f32 %s203, %s214
    %vm216 = vcmp.eq.s32.totalorder %v186, 0
    %v217 = vstv %s215
    %v218 = vsel %vm216, %v217, 0.0
    %219 = vst [vmem:[#allocation7] sm:$0x1] %v218
    // Predicated region
    $region18: #{tpu_custom_call.1} parent=1 // pred_check
      _
    $region19: #{tpu_custom_call.1} parent=1 // pred_check_branch
      %221 = sbr.rel (0) target = $region21
    $region20: #{tpu_custom_call.1} parent=1 // pred_region
      %s223 = ssub.s32 16, 16
      %224 = vsyncadd [#allocation4], %s223
      %s226 = sshll.u32 [#allocation7], 4
      %s227 = int_to_ptr.vmem [resolvable:$true] %s226
      %229 = dma.vmem_to_hbm [thread:$0]  %s227, 16, %s2, [#allocation4]
    $region21: #{tpu_custom_call.1} parent=1 // pred_fallthru
      _
    // Predicated region
    $region22: #{tpu_custom_call.1} parent=1 // pred_check
      _
    $region23: #{tpu_custom_call.1} parent=1 // pred_check_branch
      %231 = sbr.rel (0) target = $region25
    $region24: #{tpu_custom_call.1} parent=1 // pred_region
      %232 = dma.done [#allocation4], 16
    $region25: #{tpu_custom_call.1} parent=1 // pred_fallthru
      _
    %233 = vsyncpa [#allocation3], 1
    %234 = vsyncpa [#allocation6], 1
    %235 = vsyncpa [#allocation4], 1

</llo_original>
